<compile_context>
chip_gen: v5e
topology: v5e:2x2
jax: 0.10.0
libtpu: 0.0.40
codegen_flags: <defaults>
</compile_context>

<pallas_src>
import jax
import jax.numpy as jnp
from jax.experimental import pallas as pl
from jax.experimental.pallas import tpu as pltpu

HIDDEN_DIM = 32
OUTPUT_DIM = 4
OUT_PAD = 8        # narrow padded logits width (full-dim block exception applies)
BN_EPS = 1e-5
LANE = 128         # lane width for hidden feature axes


# ---------------------------------------------------------------------------
# Kernel: 3x (matmul + bias + relu), hidden axes lane-padded, narrow output.
# ---------------------------------------------------------------------------
def _mlp_kernel(x_ref, w1_ref, w2_ref, w3_ref, bias_ref, out_ref):
    # Cast to MXU dtype inside the kernel (no wrapper-side pre-cast / extra HBM pass).
    x = x_ref[...].astype(w1_ref.dtype)

    b1 = bias_ref[0:1, :]                       # (1, 128) f32
    b2 = bias_ref[1:2, :]                       # (1, 128) f32
    b3 = bias_ref[2:3, :][:, :OUT_PAD]          # (1, 8) f32

    # fc1 (+ folded bn1) + relu  -- MXU matmul, f32 accumulate, f32 epilogue
    h1 = jnp.dot(x, w1_ref[...], preferred_element_type=jnp.float32) + b1
    h1 = jnp.maximum(h1, 0.0)
    # dropout(p=0.3, training=False) -> identity

    # fc2 (+ folded bn2) + relu
    h2 = jnp.dot(h1.astype(w2_ref.dtype), w2_ref[...],
                 preferred_element_type=jnp.float32) + b2
    h2 = jnp.maximum(h2, 0.0)
    # dropout -> identity

    # fc3 (logits): narrow (tb, 8) f32 store -> HBM write traffic is ~logit-sized.
    out_ref[...] = jnp.dot(h2.astype(w3_ref.dtype), w3_ref[...],
                           preferred_element_type=jnp.float32) + b3


# ---------------------------------------------------------------------------
# Host-side parameter prep: fold BN, pad, pack biases.
# ---------------------------------------------------------------------------
def _pad2(a, rows, cols):
    r, c = a.shape
    return jnp.pad(a, ((0, rows - r), (0, cols - c)))


def fold_and_pack_params(p, weight_dtype=jnp.bfloat16):
    """Fold eval-mode BatchNorm into the linear layers and pad for the kernel."""
    # scale = gamma * rsqrt(var + eps);  w' = w * scale;  b' = (b - mean)*scale + beta
    s1 = p["g1"] * jax.lax.rsqrt(p["v1"] + BN_EPS)          # (1, h1)
    w1f = p["w1"] * s1
    b1f = (p["b1"] - p["m1"]) * s1 + p["be1"]

    s2 = p["g2"] * jax.lax.rsqrt(p["v2"] + BN_EPS)          # (1, h2)
    w2f = p["w2"] * s2
    b2f = (p["b2"] - p["m2"]) * s2 + p["be2"]

    w3f, b3f = p["w3"], p["b3"]

    d_in = w1f.shape[0]
    w1p = _pad2(w1f, d_in, LANE)            # (D, 128)     (input K dim NOT padded)
    w2p = _pad2(w2f, LANE, LANE)            # (128, 128)
    w3p = _pad2(w3f, LANE, OUT_PAD)         # (128, 8)  -> narrow output lanes

    bias = jnp.concatenate(
        [_pad2(b1f, 1, LANE), _pad2(b2f, 1, LANE), _pad2(b3f, 1, LANE)], axis=0
    )                                        # (3, 128), stays f32

    return dict(
        w1=w1p.astype(weight_dtype),
        w2=w2p.astype(weight_dtype),
        w3=w3p.astype(weight_dtype),
        bias=bias.astype(jnp.float32),
    )


# ---------------------------------------------------------------------------
# Batch tile selection: multiple of 8, >= 2 grid steps when B > 8 (v7x 2-TC).
# ---------------------------------------------------------------------------
def _round_up(n, m):
    return ((n + m - 1) // m) * m


def _choose_batch_tile(B, block_batch):
    if B <= 8:
        return B                                  # single tiny tile (full-dim block)
    tb = min(block_batch, _round_up(B, 8))
    if pl.cdiv(B, tb) < 2:
        # Guarantee >= 2 grid steps so "parallel" feeds both v7x TensorCores.
        tb = max(8, _round_up(pl.cdiv(B, 2), 8))
    return _round_up(tb, 8)


# ---------------------------------------------------------------------------
# Wrapper: batch-tiled pallas_call.
# ---------------------------------------------------------------------------
def food_preference_forward(x, prep, *, block_batch=2048):
    """Fused forward pass of FoodPreferenceModel (eval mode). Returns (B, OUTPUT_DIM)."""
    B, D = x.shape
    w1, w2, w3, bias = prep["w1"], prep["w2"], prep["w3"], prep["bias"]

    tb = _choose_batch_tile(B, block_batch)
    grid = (pl.cdiv(B, tb),)

    # Explicit VMEM budget (generous floor) so large tiles stay safe under v5e's
    # 16 MiB default scoped VMEM; actual need here is well under 1 MiB.
    weights_bytes = w1.nbytes + w2.nbytes + w3.nbytes + bias.nbytes
    est = 2 * (tb * D * x.dtype.itemsize + tb * OUT_PAD * 4) + weights_bytes
    vmem_limit = int(min(max(4 * est, 16 * 1024 * 1024), 100 * 1024 * 1024))

    out_padded = pl.pallas_call(
        _mlp_kernel,
        out_shape=jax.ShapeDtypeStruct((B, OUT_PAD), jnp.float32),
        grid=grid,
        in_specs=[
            pl.BlockSpec((tb, D), lambda i: (i, 0)),          # x: tiled over batch (native dtype)
            pl.BlockSpec(w1.shape, lambda i: (0, 0)),         # weights: VMEM-resident
            pl.BlockSpec(w2.shape, lambda i: (0, 0)),
            pl.BlockSpec(w3.shape, lambda i: (0, 0)),
            pl.BlockSpec(bias.shape, lambda i: (0, 0)),       # packed biases
        ],
        out_specs=pl.BlockSpec((tb, OUT_PAD), lambda i: (i, 0)),
        compiler_params=pltpu.CompilerParams(
            dimension_semantics=("parallel",),                # megacore / v7x 2-TC sharding
            vmem_limit_bytes=vmem_limit,
        ),
    )(x, w1, w2, w3, bias)

    return out_padded[:, :OUTPUT_DIM]


# ---------------------------------------------------------------------------
# Deterministic synthetic parameters (PyTorch-equivalent shapes) + reference.
# ---------------------------------------------------------------------------
def init_params(key, input_dim):
    h1 = HIDDEN_DIM
    h2 = HIDDEN_DIM // 2
    ks = jax.random.split(key, 10)

    def lin(kw, kb, fan_in, fan_out):
        bound = 1.0 / jnp.sqrt(fan_in)
        w = jax.random.uniform(kw, (fan_in, fan_out), jnp.float32, -bound, bound)
        b = jax.random.uniform(kb, (1, fan_out), jnp.float32, -bound, bound)
        return w, b

    w1, b1 = lin(ks[0], ks[1], input_dim, h1)
    w2, b2 = lin(ks[2], ks[3], h1, h2)
    w3, b3 = lin(ks[4], ks[5], h2, OUTPUT_DIM)

    g1 = 1.0 + 0.1 * jax.random.normal(ks[6], (1, h1), jnp.float32)
    be1 = 0.1 * jax.random.normal(ks[7], (1, h1), jnp.float32)
    m1 = 0.05 * jax.random.normal(ks[8], (1, h1), jnp.float32)
    v1 = 1.0 + 0.1 * jnp.abs(jax.random.normal(ks[9], (1, h1), jnp.float32))

    g2 = jnp.ones((1, h2), jnp.float32)
    be2 = jnp.zeros((1, h2), jnp.float32)
    m2 = jnp.zeros((1, h2), jnp.float32)
    v2 = jnp.ones((1, h2), jnp.float32)

    return dict(w1=w1, b1=b1, g1=g1, be1=be1, m1=m1, v1=v1,
                w2=w2, b2=b2, g2=g2, be2=be2, m2=m2, v2=v2,
                w3=w3, b3=b3)


def reference_forward(x, p):
    """Pure-JAX reference (unfolded BN, f32) for correctness check."""
    h = x @ p["w1"] + p["b1"]
    h = (h - p["m1"]) / jnp.sqrt(p["v1"] + BN_EPS) * p["g1"] + p["be1"]
    h = jnp.maximum(h, 0.0)
    h = h @ p["w2"] + p["b2"]
    h = (h - p["m2"]) / jnp.sqrt(p["v2"] + BN_EPS) * p["g2"] + p["be2"]
    h = jnp.maximum(h, 0.0)
    return h @ p["w3"] + p["b3"]


if __name__ == "__main__":
    INPUT_DIM = 16
    BATCH = 8

    key = jax.random.PRNGKey(0)
    k_x, k_p, k_x2 = jax.random.split(key, 3)
    x = jax.random.normal(k_x, (BATCH, INPUT_DIM), jnp.float32)
    params = init_params(k_p, INPUT_DIM)

    prep_f32 = fold_and_pack_params(params, jnp.float32)
    prep_bf16 = fold_and_pack_params(params, jnp.bfloat16)

    ref = reference_forward(x, params)

    # f32 weights: tight numerical check of the fused (BN-folded, padded) kernel.
    out_f32 = jax.block_until_ready(food_preference_forward(x, prep_f32))
    assert out_f32.shape == (BATCH, OUTPUT_DIM)
    assert jnp.allclose(out_f32, ref, atol=1e-4, rtol=1e-4)

    # bf16 weights + in-kernel bf16 activation cast (f32 accumulate / epilogue).
    out_bf16 = jax.block_until_ready(food_preference_forward(x, prep_bf16))
    assert out_bf16.shape == (BATCH, OUTPUT_DIM)
    assert jnp.allclose(out_bf16, ref, atol=5e-2, rtol=5e-2)

    # Multi-step grid path (>=2 tiles, partial last tile) to exercise tiling logic.
    B2 = 300
    x2 = jax.random.normal(k_x2, (B2, INPUT_DIM), jnp.float32)
    ref2 = reference_forward(x2, params)
    out2 = jax.block_until_ready(food_preference_forward(x2, prep_f32))
    assert out2.shape == (B2, OUTPUT_DIM)
    assert jnp.allclose(out2, ref2, atol=1e-4, rtol=1e-4)

    print("KERNEL_OK")
</pallas_src>

<mosaic_0001>
module attributes {stable_mosaic.version = 11 : i64} {
  func.func @_mlp_kernel(%arg0: i32, %arg1: memref<8x16xf32, #tpu.memory_space<vmem>>, %arg2: memref<16x128xf32, #tpu.memory_space<vmem>>, %arg3: memref<128x128xf32, #tpu.memory_space<vmem>>, %arg4: memref<128x8xf32, #tpu.memory_space<vmem>>, %arg5: memref<3x128xf32, #tpu.memory_space<vmem>>, %arg6: memref<8x8xf32, #tpu.memory_space<vmem>>) attributes {dimension_semantics = [#tpu.dimension_semantics<parallel>], iteration_bounds = array<i64: 1>, scalar_prefetch = 0 : i64, scratch_operands = 0 : i64, tpu.core_type = #tpu.core_type<tc>, window_params = [{transform_indices = @transform_0, window_bounds = array<i64: 8, 16>}, {pipeline_mode = #tpu.pipeline_mode<synchronous>, transform_indices = @transform_1, window_bounds = array<i64: 16, 128>}, {pipeline_mode = #tpu.pipeline_mode<synchronous>, transform_indices = @transform_2, window_bounds = array<i64: 128, 128>}, {pipeline_mode = #tpu.pipeline_mode<synchronous>, transform_indices = @transform_3, window_bounds = array<i64: 128, 8>}, {pipeline_mode = #tpu.pipeline_mode<synchronous>, transform_indices = @transform_4, window_bounds = array<i64: 3, 128>}, {transform_indices = @transform_5, window_bounds = array<i64: 8, 8>}]} {
    %c0 = arith.constant 0 : index
    %c0_0 = arith.constant 0 : index
    %0 = vector.load %arg1[%c0, %c0_0] : memref<8x16xf32, #tpu.memory_space<vmem>>, vector<8x16xf32>
    %c0_1 = arith.constant 0 : index
    %c0_2 = arith.constant 0 : index
    %1 = vector.load %arg5[%c0_1, %c0_2] : memref<3x128xf32, #tpu.memory_space<vmem>>, vector<1x128xf32>
    %c1 = arith.constant 1 : index
    %c0_3 = arith.constant 0 : index
    %2 = vector.load %arg5[%c1, %c0_3] : memref<3x128xf32, #tpu.memory_space<vmem>>, vector<1x128xf32>
    %c2 = arith.constant 2 : index
    %c0_4 = arith.constant 0 : index
    %3 = vector.load %arg5[%c2, %c0_4] : memref<3x128xf32, #tpu.memory_space<vmem>>, vector<1x128xf32>
    %4 = vector.extract_strided_slice %3 {offsets = [0, 0], sizes = [1, 8], strides = [1, 1]} : vector<1x128xf32> to vector<1x8xf32>
    %c0_5 = arith.constant 0 : index
    %c0_6 = arith.constant 0 : index
    %5 = vector.load %arg2[%c0_5, %c0_6] : memref<16x128xf32, #tpu.memory_space<vmem>>, vector<16x128xf32>
    %cst = arith.constant dense<0.000000e+00> : vector<8x128xf32>
    %6 = tpu.matmul %0, %5, %cst {dimension_numbers = #tpu.dot_dimension_numbers<[1], [0], [0], [1], [0, 0, 1, 1], [], []>} : vector<8x16xf32>, vector<16x128xf32>, vector<8x128xf32> -> vector<8x128xf32>
    %7 = vector.broadcast %1 : vector<1x128xf32> to vector<8x128xf32>
    %8 = arith.addf %6, %7 : vector<8x128xf32>
    %cst_7 = arith.constant 0.000000e+00 : f32
    %9 = vector.broadcast %cst_7 : f32 to vector<8x128xf32>
    %10 = arith.maximumf %8, %9 : vector<8x128xf32>
    %c0_8 = arith.constant 0 : index
    %c0_9 = arith.constant 0 : index
    %11 = vector.load %arg3[%c0_8, %c0_9] : memref<128x128xf32, #tpu.memory_space<vmem>>, vector<128x128xf32>
    %cst_10 = arith.constant dense<0.000000e+00> : vector<8x128xf32>
    %12 = tpu.matmul %10, %11, %cst_10 {dimension_numbers = #tpu.dot_dimension_numbers<[1], [0], [0], [1], [0, 0, 1, 1], [], []>} : vector<8x128xf32>, vector<128x128xf32>, vector<8x128xf32> -> vector<8x128xf32>
    %13 = vector.broadcast %2 : vector<1x128xf32> to vector<8x128xf32>
    %14 = arith.addf %12, %13 : vector<8x128xf32>
    %cst_11 = arith.constant 0.000000e+00 : f32
    %15 = vector.broadcast %cst_11 : f32 to vector<8x128xf32>
    %16 = arith.maximumf %14, %15 : vector<8x128xf32>
    %c0_12 = arith.constant 0 : index
    %c0_13 = arith.constant 0 : index
    %17 = vector.load %arg4[%c0_12, %c0_13] : memref<128x8xf32, #tpu.memory_space<vmem>>, vector<128x8xf32>
    %cst_14 = arith.constant dense<0.000000e+00> : vector<8x8xf32>
    %18 = tpu.matmul %16, %17, %cst_14 {dimension_numbers = #tpu.dot_dimension_numbers<[1], [0], [0], [1], [0, 0, 1, 1], [], []>} : vector<8x128xf32>, vector<128x8xf32>, vector<8x8xf32> -> vector<8x8xf32>
    %19 = vector.broadcast %4 : vector<1x8xf32> to vector<8x8xf32>
    %20 = arith.addf %18, %19 : vector<8x8xf32>
    %c0_15 = arith.constant 0 : index
    %c0_16 = arith.constant 0 : index
    %21 = vector.load %arg6[%c0_15, %c0_16] : memref<8x8xf32, #tpu.memory_space<vmem>>, vector<8x8xf32>
    tpu.vector_store %arg6[%c0_15, %c0_16], %20 {strides = array<i32>} : memref<8x8xf32, #tpu.memory_space<vmem>>, vector<8x8xf32>,
    return
  }
  func.func @transform_0(%arg0: i32) -> (i32, i32) {
    %c0_i32 = arith.constant 0 : i32
    %c0_i32_0 = arith.constant 0 : i32
    return %arg0, %c0_i32 : i32, i32
  }
  func.func @transform_1(%arg0: i32) -> (i32, i32) {
    %c0_i32 = arith.constant 0 : i32
    %c0_i32_0 = arith.constant 0 : i32
    %c0_i32_1 = arith.constant 0 : i32
    return %c0_i32, %c0_i32_0 : i32, i32
  }
  func.func @transform_2(%arg0: i32) -> (i32, i32) {
    %c0_i32 = arith.constant 0 : i32
    %c0_i32_0 = arith.constant 0 : i32
    %c0_i32_1 = arith.constant 0 : i32
    return %c0_i32, %c0_i32_0 : i32, i32
  }
  func.func @transform_3(%arg0: i32) -> (i32, i32) {
    %c0_i32 = arith.constant 0 : i32
    %c0_i32_0 = arith.constant 0 : i32
    %c0_i32_1 = arith.constant 0 : i32
    return %c0_i32, %c0_i32_0 : i32, i32
  }
  func.func @transform_4(%arg0: i32) -> (i32, i32) {
    %c0_i32 = arith.constant 0 : i32
    %c0_i32_0 = arith.constant 0 : i32
    %c0_i32_1 = arith.constant 0 : i32
    return %c0_i32, %c0_i32_0 : i32, i32
  }
  func.func @transform_5(%arg0: i32) -> (i32, i32) {
    %c0_i32 = arith.constant 0 : i32
    %c0_i32_0 = arith.constant 0 : i32
    return %arg0, %c0_i32 : i32, i32
  }
}

</mosaic_0001>

<llo_original>
// kernel: tpu_custom_call.1
$region0: #{tpu_custom_call.1}
  #allocation0 [shape = 'u32[]', space=smem, size = 0x4, offset = 0x4, fixed_abs, tag = 'smem constant byte address 0x4 - core index']
  #allocation1 [shape = 'u32[72,128]{1,0:T(1,128)}', space=vmem, size = 0x9000, scoped, tag = 'internal scratch']
  %s0 = inlined_call_operand.vmem [shape: f32[8,16], index: 0, kind: input, shape index: {}]
  %s1 = inlined_call_operand.hbm [shape: f32[16,128], index: 1, kind: input, shape index: {}]
  %s2 = inlined_call_operand.vmem [shape: f32[128,128], index: 2, kind: input, shape index: {}]
  %s3 = inlined_call_operand.vmem [shape: f32[128,8], index: 3, kind: input, shape index: {}]
  %s4 = inlined_call_operand.hbm [shape: f32[3,128], index: 4, kind: input, shape index: {}]
  %s5 = inlined_call_operand.hbm [shape: f32[8,8], index: 5, kind: output, shape index: {}]
  %s6 = sld [smem:[#allocation0]]
  $region38: #{tpu_custom_call.1} parent=0
    _
  %s8 = ssub.s32 1, %s6
  %s9 = scalar_select 0, %s8, %s6
  $region1: #{tpu_custom_call.1} parent=0
    #allocation2 [shape = 'u8[8192]{0}', space=vmem, size = 0x2000, scoped, tag = 'input window, operand 1, single buffered']
    #allocation3 [shape = 's32[1]{0}', space=sflag, size = 0x4, scoped, tag = 'scoped memory for tpu_custom_call.1']
    #allocation4 [shape = 's32[1]{0}', space=sflag, size = 0x4, scoped, tag = 'scoped memory for tpu_custom_call.1']
    #allocation5 [shape = 'u8[2048]{0}', space=vmem, size = 0x800, scoped, tag = 'input window, operand 4, single buffered']
    #allocation6 [shape = 's32[1]{0}', space=sflag, size = 0x4, scoped, tag = 'scoped memory for tpu_custom_call.1']
    #allocation7 [shape = 'u8[4096]{0}', space=vmem, size = 0x1000, scoped, tag = 'output window, operand 0, single buffered']
    %10 = vsyncpa [#allocation3], 0
    %11 = vsyncpa [#allocation6], 0
    %12 = vsyncpa [#allocation4], 0
    // Predicated region
    $region2: #{tpu_custom_call.1} parent=1 // pred_check
      _
    $region3: #{tpu_custom_call.1} parent=1 // pred_check_branch
      %14 = sbr.rel (0) target = $region5
    $region4: #{tpu_custom_call.1} parent=1 // pred_region
      _
    $region5: #{tpu_custom_call.1} parent=1 // pred_fallthru
      _
    // Predicated region
    $region6: #{tpu_custom_call.1} parent=1 // pred_check
      _
    $region7: #{tpu_custom_call.1} parent=1 // pred_check_branch
      %16 = sbr.rel (0) target = $region9
    $region8: #{tpu_custom_call.1} parent=1 // pred_region
      %18 = vsyncadd [#allocation3], 0
      %s19 = sshll.u32 %s1, 4
      %s20 = int_to_ptr.hbm [resolvable:$true] %s19
      %s21 = sshll.u32 [#allocation2], 4
      %s22 = int_to_ptr.vmem [resolvable:$true] %s21
      %27 = dma.hbm_to_vmem [thread:$0]  %s20, 256, %s22, [#allocation3], 128, 128, 8
    $region9: #{tpu_custom_call.1} parent=1 // pred_fallthru
      _
    // Predicated region
    $region10: #{tpu_custom_call.1} parent=1 // pred_check
      _
    $region11: #{tpu_custom_call.1} parent=1 // pred_check_branch
      %29 = sbr.rel (0) target = $region13
    $region12: #{tpu_custom_call.1} parent=1 // pred_region
      _
    $region13: #{tpu_custom_call.1} parent=1 // pred_fallthru
      _
    // Predicated region
    $region14: #{tpu_custom_call.1} parent=1 // pred_check
      _
    $region15: #{tpu_custom_call.1} parent=1 // pred_check_branch
      %31 = sbr.rel (0) target = $region17
    $region16: #{tpu_custom_call.1} parent=1 // pred_region
      _
    $region17: #{tpu_custom_call.1} parent=1 // pred_fallthru
      _
    // Predicated region
    $region18: #{tpu_custom_call.1} parent=1 // pred_check
      _
    $region19: #{tpu_custom_call.1} parent=1 // pred_check_branch
      %33 = sbr.rel (0) target = $region21
    $region20: #{tpu_custom_call.1} parent=1 // pred_region
      %35 = vsyncadd [#allocation6], 0
      %s37 = sshll.u32 %s4, 4
      %s38 = int_to_ptr.hbm [resolvable:$true] %s37
      %s39 = sshll.u32 [#allocation5], 4
      %s40 = int_to_ptr.vmem [resolvable:$true] %s39
      %42 = dma.hbm_to_vmem [thread:$0]  %s38, 64, %s40, [#allocation6]
    $region21: #{tpu_custom_call.1} parent=1 // pred_fallthru
      _
    // Predicated region
    $region22: #{tpu_custom_call.1} parent=1 // pred_check
      _
    $region23: #{tpu_custom_call.1} parent=1 // pred_check_branch
      %44 = sbr.rel (0) target = $region25
    $region24: #{tpu_custom_call.1} parent=1 // pred_region
      %46 = dma.done [#allocation3], 256
    $region25: #{tpu_custom_call.1} parent=1 // pred_fallthru
      _
    // Predicated region
    $region26: #{tpu_custom_call.1} parent=1 // pred_check
      _
    $region27: #{tpu_custom_call.1} parent=1 // pred_check_branch
      %48 = sbr.rel (0) target = $region29
    $region28: #{tpu_custom_call.1} parent=1 // pred_region
      %50 = dma.done [#allocation6], 64
    $region29: #{tpu_custom_call.1} parent=1 // pred_fallthru
      _
    %v51 = vld [vmem:[%s0] sm:$0xff]
    %v52 = vld [vmem:[#allocation5] sm:$0x1]
    %v53 = vld [vmem:[#allocation5 + $0x1] sm:$0x1]
    %v54 = vld [vmem:[#allocation5 + $0x2] sm:$0x1]
    %v55 = vld [vmem:[#allocation2] sm:$0xff]
    %v56 = vld [vmem:[#allocation2 + $0x8] sm:$0xff]
    %v57 = vperm.slane %v52, 0
    %vm58 = vcmask 130048
    %v60 = vsel %vm58, %v51, 0
    %62 = vmatpush.msra.mxu0 0.0
    %63 = vmatpush.msra.mxu0 0.0
    %64 = vmatpush.msra.mxu0 0.0
    %65 = vmatpush.msra.mxu0 0.0
    %66 = vmatpush.msra.mxu0 0.0
    %67 = vmatpush.msra.mxu0 0.0
    %68 = vmatpush.msra.mxu0 0.0
    %69 = vmatpush.msra.mxu0 0.0
    %70 = vmatpush.msra.mxu0 0.0
    %71 = vmatpush.msra.mxu0 0.0
    %72 = vmatpush.msra.mxu0 0.0
    %73 = vmatpush.msra.mxu0 0.0
    %74 = vmatpush.msra.mxu0 0.0
    %75 = vmatpush.msra.mxu0 0.0
    %76 = vmatpush.msra.mxu0 %v56
    %77 = vmatpush.msra.mxu0 %v55
    %78 = vmatmul.f32.gmra.mxu0 %v60
    %v79 = vpop.f32.mrf.mxu0
    %v80 = vadd.f32 %v57, %v79
    %81 = vdwg.mxu0
    %v82 = vmax.f32 %v80, 0.0
    %v83 = vld [vmem:[%s2] sm:$0xff]
    %v84 = vld [vmem:[%s2 + $0x8] sm:$0xff]
    %v85 = vld [vmem:[%s2 + $0x10] sm:$0xff]
    %v86 = vld [vmem:[%s2 + $0x18] sm:$0xff]
    %v87 = vld [vmem:[%s2 + $0x20] sm:$0xff]
    %v88 = vld [vmem:[%s2 + $0x28] sm:$0xff]
    %v89 = vld [vmem:[%s2 + $0x30] sm:$0xff]
    %v90 = vld [vmem:[%s2 + $0x38] sm:$0xff]
    %v91 = vld [vmem:[%s2 + $0x40] sm:$0xff]
    %v92 = vld [vmem:[%s2 + $0x48] sm:$0xff]
    %v93 = vld [vmem:[%s2 + $0x50] sm:$0xff]
    %v94 = vld [vmem:[%s2 + $0x58] sm:$0xff]
    %v95 = vld [vmem:[%s2 + $0x60] sm:$0xff]
    %v96 = vld [vmem:[%s2 + $0x68] sm:$0xff]
    %v97 = vld [vmem:[%s2 + $0x70] sm:$0xff]
    %v98 = vld [vmem:[%s2 + $0x78] sm:$0xff]
    %v99 = vperm.slane %v53, 0
    %100 = vmatpush.msra.mxu0 %v98
    %101 = vmatpush.msra.mxu0 %v97
    %102 = vmatpush.msra.mxu0 %v96
    %103 = vmatpush.msra.mxu0 %v95
    %104 = vmatpush.msra.mxu0 %v94
    %105 = vmatpush.msra.mxu0 %v93
    %106 = vmatpush.msra.mxu0 %v92
    %107 = vmatpush.msra.mxu0 %v91
    %108 = vmatpush.msra.mxu0 %v90
    %109 = vmatpush.msra.mxu0 %v89
    %110 = vmatpush.msra.mxu0 %v88
    %111 = vmatpush.msra.mxu0 %v87
    %112 = vmatpush.msra.mxu0 %v86
    %113 = vmatpush.msra.mxu0 %v85
    %114 = vmatpush.msra.mxu0 %v84
    %115 = vmatpush.msra.mxu0 %v83
    %116 = vmatmul.f32.gmra.mxu0 %v82
    %v117 = vpop.f32.mrf.mxu0
    %v118 = vadd.f32 %v99, %v117
    %119 = vdwg.mxu0
    %v120 = vmax.f32 %v118, 0.0
    %v121 = vld [vmem:[%s3] sm:$0xff]
    %v122 = vld [vmem:[%s3 + $0x8] sm:$0xff]
    %v123 = vld [vmem:[%s3 + $0x10] sm:$0xff]
    %v124 = vld [vmem:[%s3 + $0x18] sm:$0xff]
    %v125 = vld [vmem:[%s3 + $0x20] sm:$0xff]
    %v126 = vld [vmem:[%s3 + $0x28] sm:$0xff]
    %v127 = vld [vmem:[%s3 + $0x30] sm:$0xff]
    %v128 = vld [vmem:[%s3 + $0x38] sm:$0xff]
    %v129 = vld [vmem:[%s3 + $0x40] sm:$0xff]
    %v130 = vld [vmem:[%s3 + $0x48] sm:$0xff]
    %v131 = vld [vmem:[%s3 + $0x50] sm:$0xff]
    %v132 = vld [vmem:[%s3 + $0x58] sm:$0xff]
    %v133 = vld [vmem:[%s3 + $0x60] sm:$0xff]
    %v134 = vld [vmem:[%s3 + $0x68] sm:$0xff]
    %v135 = vld [vmem:[%s3 + $0x70] sm:$0xff]
    %v136 = vld [vmem:[%s3 + $0x78] sm:$0xff]
    %v137 = vperm.slane %v54, 0
    %138 = vmatpush.msra.mxu0 %v136
    %139 = vmatpush.msra.mxu0 %v135
    %140 = vmatpush.msra.mxu0 %v134
    %141 = vmatpush.msra.mxu0 %v133
    %142 = vmatpush.msra.mxu0 %v132
    %143 = vmatpush.msra.mxu0 %v131
    %144 = vmatpush.msra.mxu0 %v130
    %145 = vmatpush.msra.mxu0 %v129
    %146 = vmatpush.msra.mxu0 %v128
    %147 = vmatpush.msra.mxu0 %v127
    %148 = vmatpush.msra.mxu0 %v126
    %149 = vmatpush.msra.mxu0 %v125
    %150 = vmatpush.msra.mxu0 %v124
    %151 = vmatpush.msra.mxu0 %v123
    %152 = vmatpush.msra.mxu0 %v122
    %153 = vmatpush.msra.mxu0 %v121
    %154 = vmatmul.f32.gmra.mxu0 %v120
    %v155 = vpop.f32.mrf.mxu0
    %v156 = vadd.f32 %v137, %v155
    %157 = vdwg.mxu0
    %vm158 = vcmask 64512
    %159 = vst.msk [vmem:[#allocation7] sm:$0xff] %vm158, %v156
    // Predicated region
    $region30: #{tpu_custom_call.1} parent=1 // pred_check
      _
    $region31: #{tpu_custom_call.1} parent=1 // pred_check_branch
      %161 = sbr.rel (0) target = $region33
    $region32: #{tpu_custom_call.1} parent=1 // pred_region
      %163 = vsyncadd [#allocation4], 0
      %s165 = sshll.u32 [#allocation7], 4
      %s166 = int_to_ptr.vmem [resolvable:$true] %s165
      %s167 = sshll.u32 %s5, 4
      %s168 = int_to_ptr.hbm [resolvable:$true] %s167
      %170 = dma.vmem_to_hbm [thread:$0]  %s166, 128, %s168, [#allocation4]
    $region33: #{tpu_custom_call.1} parent=1 // pred_fallthru
      _
    // Predicated region
    $region34: #{tpu_custom_call.1} parent=1 // pred_check
      _
    $region35: #{tpu_custom_call.1} parent=1 // pred_check_branch
      %172 = sbr.rel (0) target = $region37
    $region36: #{tpu_custom_call.1} parent=1 // pred_region
      %174 = dma.done [#allocation4], 128
    $region37: #{tpu_custom_call.1} parent=1 // pred_fallthru
      _
    %175 = vsyncpa [#allocation3], 1
    %176 = vsyncpa [#allocation6], 1
    %177 = vsyncpa [#allocation4], 1

</llo_original>
